<compile_context>
chip_gen: v6e
topology: v6e:2x2x1
jax: 0.10.0
libtpu: 0.0.40
codegen_flags: <defaults>
</compile_context>

<pallas_src>
import functools

import jax
import jax.numpy as jnp
from jax.experimental import pallas as pl
from jax.experimental.pallas import tpu as pltpu

LEAKY_SLOPE = 0.01            # F.leaky_relu default
DPAD = 128                    # dim_id (=64) padded to a lane-dense 128
BLOCK = 256                   # row / contraction tile of the propagation matmul
VMEM_LIMIT = 32 * 1024 * 1024  # safe on v5e/v6e/v7x; tiles above use ~2.5 MiB


def _round_up(x, m):
    return (x + m - 1) // m * m


def _leaky_relu(x):
    return jnp.where(x >= 0, x, LEAKY_SLOPE * x)


def _l2_normalize(x, eps=1e-12):
    n = jnp.sqrt(jnp.sum(x * x, axis=-1, keepdims=True))
    return x / jnp.maximum(n, eps)


def _pad2(a, rows, cols):
    return jnp.zeros((rows, cols), a.dtype).at[: a.shape[0], : a.shape[1]].set(a)


# --------------------------------------------------------------------------- #
# Kernels
# --------------------------------------------------------------------------- #
def prep_kernel(feat_ref, w_ref, b_ref, out_ref):
    # temp_features = MLP(features); F.normalize(., dim=1)    (row-tiled over items)
    y = jnp.dot(feat_ref[...], w_ref[...],
                preferred_element_type=jnp.float32) + b_ref[...]
    norm = jnp.sqrt(jnp.sum(y * y, axis=-1, keepdims=True))
    out_ref[...] = (y / jnp.maximum(norm, 1e-12)).astype(out_ref.dtype)


def gcn_layer_kernel(adj_ref, xk_ref, xi_ref, id_ref,
                     wconv_ref, wlin_ref, blin_ref, wg_ref, bg_ref,
                     out_ref, acc_ref, *, n_mod, dpad):
    """One fused MMGCN layer for all n_mod modalities.

    grid = (row tiles i, contraction tiles k); k is the reduction axis.
      acc[i] += Adj[i, k] @ X[k]                       (all modalities at once)
      at the last k, per modality m:
        h     = lrelu(acc_m @ Wconv_m)                 (== lrelu(Adj @ (x @ Wconv)))
        x_hat = lrelu(x_m @ Wlin_m^T + b_lin) + id
        out_m = lrelu(h @ Wg_m^T + b_g + x_hat)        (concate=False, has_id=True)
    """
    k = pl.program_id(1)

    @pl.when(k == 0)
    def _init():
        acc_ref[...] = jnp.zeros_like(acc_ref)

    acc_ref[...] += jnp.dot(adj_ref[...], xk_ref[...],
                            preferred_element_type=jnp.float32)

    @pl.when(k == pl.num_programs(1) - 1)
    def _finalize():
        x_i = xi_ref[...]                                  # (tm, n_mod*dpad) bf16
        id_e = id_ref[...]                                 # (tm, dpad) f32
        for m in range(n_mod):
            lo, hi = m * dpad, (m + 1) * dpad
            agg = acc_ref[:, lo:hi].astype(jnp.bfloat16)   # propagated x, modality m
            h = _leaky_relu(jnp.dot(agg, wconv_ref[m],
                                    preferred_element_type=jnp.float32))
            x_hat = _leaky_relu(
                jnp.dot(x_i[:, lo:hi], wlin_ref[m],
                        preferred_element_type=jnp.float32) + blin_ref[m]) + id_e
            g = jnp.dot(h.astype(jnp.bfloat16), wg_ref[m],
                        preferred_element_type=jnp.float32) + bg_ref[m]
            out_ref[:, lo:hi] = _leaky_relu(g + x_hat).astype(out_ref.dtype)


# --------------------------------------------------------------------------- #
# Pallas wrappers
# --------------------------------------------------------------------------- #
def mlp_normalize(feat, w_t, b, *, block_rows=BLOCK):
    """x_items = F.normalize(MLP(features)) — row-tiled, bf16 matmul, f32 accumulate."""
    rows, dfeat = feat.shape
    dlat = w_t.shape[1]
    tm = block_rows if rows >= block_rows else _round_up(rows, 8)
    rows_pad = _round_up(rows, tm)
    feat_p = jnp.pad(feat, ((0, rows_pad - rows), (0, 0))).astype(jnp.bfloat16)
    out = pl.pallas_call(
        prep_kernel,
        out_shape=jax.ShapeDtypeStruct((rows_pad, dlat), jnp.bfloat16),
        grid=(rows_pad // tm,),
        in_specs=[pl.BlockSpec((tm, dfeat), lambda i: (i, 0)),
                  pl.BlockSpec((dfeat, dlat), lambda i: (0, 0)),
                  pl.BlockSpec((1, dlat), lambda i: (0, 0))],
        out_specs=pl.BlockSpec((tm, dlat), lambda i: (i, 0)),
        compiler_params=pltpu.CompilerParams(
            dimension_semantics=("parallel",),
            vmem_limit_bytes=VMEM_LIMIT),
    )(feat_p, w_t, b)
    return out[:rows]


def gcn_layer(adj_pad, x_pad, id_pad, lw, *, n_mod, dpad=DPAD, tm=BLOCK, tk=BLOCK):
    """Fused multi-modality GCN layer over the padded node set."""
    n_pad = adj_pad.shape[0]
    assert n_pad % tm == 0 and n_pad % tk == 0
    width = n_mod * dpad
    kernel = functools.partial(gcn_layer_kernel, n_mod=n_mod, dpad=dpad)
    return pl.pallas_call(
        kernel,
        out_shape=jax.ShapeDtypeStruct((n_pad, width), jnp.bfloat16),
        grid=(n_pad // tm, n_pad // tk),
        in_specs=[
            pl.BlockSpec((tm, tk), lambda i, k: (i, k)),                # Adj tile
            pl.BlockSpec((tk, width), lambda i, k: (k, 0)),             # X contraction slab
            pl.BlockSpec((tm, width), lambda i, k: (i, 0)),             # X row slab (x_hat)
            pl.BlockSpec((tm, dpad), lambda i, k: (i, 0)),              # id embedding (padded)
            pl.BlockSpec((n_mod, dpad, dpad), lambda i, k: (0, 0, 0)),  # Wconv stack
            pl.BlockSpec((n_mod, dpad, dpad), lambda i, k: (0, 0, 0)),  # Wlin^T stack
            pl.BlockSpec((n_mod, 1, dpad), lambda i, k: (0, 0, 0)),     # b_lin stack
            pl.BlockSpec((n_mod, dpad, dpad), lambda i, k: (0, 0, 0)),  # Wg^T stack
            pl.BlockSpec((n_mod, 1, dpad), lambda i, k: (0, 0, 0)),     # b_g stack
        ],
        out_specs=pl.BlockSpec((tm, width), lambda i, k: (i, 0)),
        scratch_shapes=[pltpu.VMEM((tm, width), jnp.float32)],
        compiler_params=pltpu.CompilerParams(
            dimension_semantics=("parallel", "arbitrary"),
            vmem_limit_bytes=VMEM_LIMIT),
    )(adj_pad, x_pad, x_pad, id_pad,
      lw["wconv"], lw["wlin_t"], lw["blin"], lw["wg_t"], lw["bg"])


# --------------------------------------------------------------------------- #
# Glue (plain JAX): adjacency, word segment-mean, params, forward, reference
# --------------------------------------------------------------------------- #
def build_mean_adj(edge_index, n):
    # PyG propagate with aggr='mean': out[i] = mean over edges (src -> dst=i) of x[src]
    src, dst = edge_index[0], edge_index[1]
    a = jnp.zeros((n, n), jnp.float32).at[dst, src].add(1.0)
    deg = jnp.sum(a, axis=1, keepdims=True)
    return a / jnp.maximum(deg, 1.0)


def word_segment_mean(word_embedding, words_tensor, num_item):
    # scatter_('mean', word_embedding(words[1]), words[0]) -> (num_item, 128)
    vecs = jnp.take(word_embedding, words_tensor[1], axis=0)
    sums = jax.ops.segment_sum(vecs, words_tensor[0], num_segments=num_item)
    cnts = jax.ops.segment_sum(jnp.ones((words_tensor.shape[1],), jnp.float32),
                               words_tensor[0], num_segments=num_item)
    return sums / jnp.maximum(cnts, 1.0)[:, None]


def xavier_normal(key, shape):
    std = (2.0 / (shape[0] + shape[1])) ** 0.5
    return std * jax.random.normal(key, shape, dtype=jnp.float32)


def _init_layer(keys, d_in, d_out, dpad):
    wconv, wlin_t, wg_t = [], [], []
    for k in keys:
        k1, k2, k3 = jax.random.split(k, 3)
        wconv.append(_pad2(xavier_normal(k1, (d_in, d_in)), dpad, dpad))
        wlin_t.append(_pad2(xavier_normal(k2, (d_out, d_in)).T, dpad, dpad))
        wg_t.append(_pad2(xavier_normal(k3, (d_out, d_in)).T, dpad, dpad))
    n_mod = len(keys)
    return {"wconv": jnp.stack(wconv).astype(jnp.bfloat16),
            "wlin_t": jnp.stack(wlin_t).astype(jnp.bfloat16),
            "blin": jnp.zeros((n_mod, 1, dpad), jnp.float32),
            "wg_t": jnp.stack(wg_t).astype(jnp.bfloat16),
            "bg": jnp.zeros((n_mod, 1, dpad), jnp.float32)}


def init_params(key, num_user, num_item, n_pad, dim_feats, dim_latent, dim_id,
                vocab, dpad=DPAD):
    n = num_user + num_item
    n_mod = len(dim_feats)
    keys = jax.random.split(key, 4 + 2 * n_mod)

    id_emb = xavier_normal(keys[0], (n, dim_id))
    id_pad = jnp.zeros((n_pad, dpad), jnp.float32).at[:n, :dim_id].set(id_emb)

    pref, mlp_w_t, mlp_b = [], [], []
    for m, df in enumerate(dim_feats):
        pref.append(xavier_normal(keys[2 + m], (num_user, dim_latent)))
        mlp_w_t.append(
            xavier_normal(keys[2 + n_mod + m], (dim_latent, df)).T.astype(jnp.bfloat16))
        mlp_b.append(jnp.zeros((1, dim_latent), jnp.float32))

    # NOTE: original forward references self.a_gcn although __init__ only builds
    # v_gcn / t_gcn — the audio GCN is instantiated analogously (dim_latent=128).
    return {
        "id_embedding": id_emb,             # (n, dim_id) f32, unpadded (reference)
        "id_pad": id_pad,                   # (n_pad, 128) f32, kernel input
        "word_embedding": xavier_normal(keys[1], (vocab, 128)),
        "pref": pref, "mlp_w_t": mlp_w_t, "mlp_b": mlp_b,
        "layer1": _init_layer(jax.random.split(keys[2 + 2 * n_mod], n_mod),
                              dim_latent, dim_id, dpad),
        "layer2": _init_layer(jax.random.split(keys[3 + 2 * n_mod], n_mod),
                              dim_id, dim_id, dpad),
    }


def mmgcn_forward(params, v_feat, a_feat, words_tensor, adj_pad,
                  user_nodes, pos_item_nodes, neg_item_nodes,
                  num_user, num_item, *, dim_id=64, dpad=DPAD):
    n = num_user + num_item
    n_pad = adj_pad.shape[0]

    # t_feat = scatter_('mean', word_embedding(words[1]), words[0])      (glue)
    t_feat = word_segment_mean(params["word_embedding"], words_tensor, num_item)

    # Per-modality input prep: x_m = F.normalize(cat(preference_m, MLP_m(feat_m)))
    feats = (v_feat, a_feat, t_feat)
    cols = []
    for m, feat in enumerate(feats):
        items = mlp_normalize(feat, params["mlp_w_t"][m], params["mlp_b"][m])
        pref = _l2_normalize(params["pref"][m]).astype(jnp.bfloat16)
        cols.append(jnp.concatenate([pref, items], axis=0))         # (n, 128)
    x = jnp.concatenate(cols, axis=1)                               # (n, 3*128)
    x = jnp.pad(x, ((0, n_pad - n), (0, 0)))                        # (n_pad, 384) bf16

    # Two fused GCN layers: one adjacency sweep per layer for all three modalities.
    x = gcn_layer(adj_pad, x, params["id_pad"], params["layer1"],
                  n_mod=len(feats), dpad=dpad)
    x = gcn_layer(adj_pad, x, params["id_pad"], params["layer2"],
                  n_mod=len(feats), dpad=dpad)

    # representation = (v_rep + a_rep + t_rep) / 3   (strip the dim_id padding)
    rep = sum(x[:, m * dpad: m * dpad + dim_id].astype(jnp.float32)
              for m in range(len(feats))) / float(len(feats))
    rep = rep[:n]

    # Gather + dot-product scores: lane-width-1 output, left to XLA (per perf review).
    user_t = rep[user_nodes]
    pos_scores = jnp.sum(user_t * rep[pos_item_nodes], axis=1)
    neg_scores = jnp.sum(user_t * rep[neg_item_nodes], axis=1)
    return pos_scores, neg_scores, rep


def reference_forward(params, feats, adj, num_user, num_item, dim_latent, dim_id):
    """Pure f32 JAX reference (unpadded, per-modality) for validation."""
    reps = []
    id_e = params["id_embedding"]
    for m, feat in enumerate(feats):
        mlp = feat @ params["mlp_w_t"][m].astype(jnp.float32) + params["mlp_b"][m]
        x = jnp.concatenate([_l2_normalize(params["pref"][m]),
                             _l2_normalize(mlp)], axis=0)
        for lw, d_in in ((params["layer1"], dim_latent), (params["layer2"], dim_id)):
            wc = lw["wconv"][m, :d_in, :d_in].astype(jnp.float32)
            wl = lw["wlin_t"][m, :d_in, :dim_id].astype(jnp.float32)
            bl = lw["blin"][m, :, :dim_id]
            wg = lw["wg_t"][m, :d_in, :dim_id].astype(jnp.float32)
            bg = lw["bg"][m, :, :dim_id]
            h = _leaky_relu(adj @ (x @ wc))
            x_hat = _leaky_relu(x @ wl + bl) + id_e
            x = _leaky_relu(h @ wg + bg + x_hat)
        reps.append(x)
    return sum(reps) / float(len(reps))


# --------------------------------------------------------------------------- #
if __name__ == "__main__":
    num_user, num_item = 96, 416
    n_nodes = num_user + num_item          # 512
    dim_x = 64                             # id / output embedding dim
    dim_v, dim_a = 160, 96
    dim_latent = 128
    vocab, num_words = 80, 600
    batch = 32

    n_pad = _round_up(n_nodes, BLOCK)      # 512 -> gcn grid (2, 2)

    key = jax.random.PRNGKey(0)
    keys = jax.random.split(key, 12)

    # features
    v_feat = jax.random.normal(keys[0], (num_item, dim_v), dtype=jnp.float32)
    a_feat = jax.random.normal(keys[1], (num_item, dim_a), dtype=jnp.float32)
    word_items = jax.random.randint(keys[2], (num_words,), 0, num_item)
    word_ids = jax.random.randint(keys[3], (num_words,), 0, vocab)
    words_tensor = jnp.stack([word_items, word_ids])          # (2, num_words)

    # edge_index: user<->item bipartite edges, symmetrized (as in MMGCN __init__)
    users = jnp.arange(num_user)
    items1 = (users % num_item) + num_user
    items2 = ((users * 7 + 3) % num_item) + num_user
    items3 = ((users * 13 + 11) % num_item) + num_user
    src = jnp.concatenate([users, users, users])
    dst = jnp.concatenate([items1, items2, items3])
    edge_index = jnp.stack([jnp.concatenate([src, dst]),
                            jnp.concatenate([dst, src])])     # (2, 2E)
    adj_f32 = build_mean_adj(edge_index, n_nodes)
    adj_pad = jnp.pad(adj_f32, ((0, n_pad - n_nodes),
                                (0, n_pad - n_nodes))).astype(jnp.bfloat16)

    params = init_params(keys[4], num_user, num_item, n_pad,
                         (dim_v, dim_a, 128), dim_latent, dim_x, vocab)

    user_nodes = jax.random.randint(keys[5], (batch,), 0, num_user)
    pos_item_nodes = jax.random.randint(keys[6], (batch,), num_user, n_nodes)
    neg_item_nodes = jax.random.randint(keys[7], (batch,), num_user, n_nodes)

    pos_scores, neg_scores, rep = mmgcn_forward(
        params, v_feat, a_feat, words_tensor, adj_pad,
        user_nodes, pos_item_nodes, neg_item_nodes, num_user, num_item)
    jax.block_until_ready((pos_scores, neg_scores, rep))

    # pure-JAX f32 reference check (loose tolerance: kernels run bf16 on the MXU)
    t_feat = word_segment_mean(params["word_embedding"], words_tensor, num_item)
    rep_ref = reference_forward(params, (v_feat, a_feat, t_feat), adj_f32,
                                num_user, num_item, dim_latent, dim_x)

    assert rep.shape == (n_nodes, dim_x)
    assert pos_scores.shape == (batch,) and neg_scores.shape == (batch,)
    assert bool(jnp.all(jnp.isfinite(pos_scores))) and bool(jnp.all(jnp.isfinite(neg_scores)))
    assert bool(jnp.allclose(rep, rep_ref, atol=1e-1, rtol=1e-1))
    print("KERNEL_OK")
</pallas_src>

<mosaic_0001>
module attributes {stable_mosaic.version = 11 : i64} {
  func.func @prep_kernel(%arg0: i32, %arg1: memref<256x160xbf16, #tpu.memory_space<vmem>>, %arg2: memref<160x128xbf16, #tpu.memory_space<vmem>>, %arg3: memref<1x128xf32, #tpu.memory_space<vmem>>, %arg4: memref<256x128xbf16, #tpu.memory_space<vmem>>) attributes {dimension_semantics = [#tpu.dimension_semantics<parallel>], iteration_bounds = array<i64: 2>, scalar_prefetch = 0 : i64, scratch_operands = 0 : i64, tpu.core_type = #tpu.core_type<tc>, window_params = [{transform_indices = @transform_0, window_bounds = array<i64: 256, 160>}, {pipeline_mode = #tpu.pipeline_mode<synchronous>, transform_indices = @transform_1, window_bounds = array<i64: 160, 128>}, {pipeline_mode = #tpu.pipeline_mode<synchronous>, transform_indices = @transform_2, window_bounds = array<i64: 1, 128>}, {transform_indices = @transform_3, window_bounds = array<i64: 256, 128>}]} {
    %c0 = arith.constant 0 : index
    %c0_0 = arith.constant 0 : index
    %0 = vector.load %arg1[%c0, %c0_0] : memref<256x160xbf16, #tpu.memory_space<vmem>>, vector<256x160xbf16>
    %c0_1 = arith.constant 0 : index
    %c0_2 = arith.constant 0 : index
    %1 = vector.load %arg2[%c0_1, %c0_2] : memref<160x128xbf16, #tpu.memory_space<vmem>>, vector<160x128xbf16>
    %cst = arith.constant dense<0.000000e+00> : vector<256x128xf32>
    %2 = tpu.matmul %0, %1, %cst {dimension_numbers = #tpu.dot_dimension_numbers<[1], [0], [0], [1], [0, 0, 1, 1], [], []>} : vector<256x160xbf16>, vector<160x128xbf16>, vector<256x128xf32> -> vector<256x128xf32>
    %c0_3 = arith.constant 0 : index
    %c0_4 = arith.constant 0 : index
    %3 = vector.load %arg3[%c0_3, %c0_4] : memref<1x128xf32, #tpu.memory_space<vmem>>, vector<1x128xf32>
    %4 = vector.broadcast %3 : vector<1x128xf32> to vector<256x128xf32>
    %5 = arith.addf %2, %4 : vector<256x128xf32>
    %6 = arith.mulf %5, %5 : vector<256x128xf32>
    %cst_5 = arith.constant dense<0.000000e+00> : vector<256xf32>
    %7 = vector.multi_reduction <add>, %6, %cst_5 [1] : vector<256x128xf32> to vector<256xf32>
    %8 = vector.shape_cast %7 : vector<256xf32> to vector<256x1xf32>
    %9 = math.sqrt %8 : vector<256x1xf32>
    %cst_6 = arith.constant 9.99999996E-13 : f32
    %10 = vector.broadcast %cst_6 : f32 to vector<256x1xf32>
    %11 = arith.maximumf %9, %10 : vector<256x1xf32>
    %12 = vector.broadcast %11 : vector<256x1xf32> to vector<256x128xf32>
    %13 = arith.divf %5, %12 : vector<256x128xf32>
    %14 = arith.truncf %13 : vector<256x128xf32> to vector<256x128xbf16>
    %c0_7 = arith.constant 0 : index
    %c0_8 = arith.constant 0 : index
    %15 = vector.load %arg4[%c0_7, %c0_8] : memref<256x128xbf16, #tpu.memory_space<vmem>>, vector<256x128xbf16>
    tpu.vector_store %arg4[%c0_7, %c0_8], %14 {strides = array<i32>} : memref<256x128xbf16, #tpu.memory_space<vmem>>, vector<256x128xbf16>,
    return
  }
  func.func @transform_0(%arg0: i32) -> (i32, i32) {
    %c0_i32 = arith.constant 0 : i32
    %c0_i32_0 = arith.constant 0 : i32
    return %arg0, %c0_i32 : i32, i32
  }
  func.func @transform_1(%arg0: i32) -> (i32, i32) {
    %c0_i32 = arith.constant 0 : i32
    %c0_i32_0 = arith.constant 0 : i32
    %c0_i32_1 = arith.constant 0 : i32
    return %c0_i32, %c0_i32_0 : i32, i32
  }
  func.func @transform_2(%arg0: i32) -> (i32, i32) {
    %c0_i32 = arith.constant 0 : i32
    %c0_i32_0 = arith.constant 0 : i32
    %c0_i32_1 = arith.constant 0 : i32
    return %c0_i32, %c0_i32_0 : i32, i32
  }
  func.func @transform_3(%arg0: i32) -> (i32, i32) {
    %c0_i32 = arith.constant 0 : i32
    %c0_i32_0 = arith.constant 0 : i32
    return %arg0, %c0_i32 : i32, i32
  }
}

</mosaic_0001>

<llo_original>
// kernel: tpu_custom_call.1
$region0: #{tpu_custom_call.1}
  #allocation0 [shape = 'u32[]', space=smem, size = 0x4, offset = 0x4, fixed_abs, tag = 'smem constant byte address 0x4 - core index']
  #allocation1 [shape = 'u32[144,128]{1,0:T(1,128)}', space=vmem, size = 0x12000, scoped, tag = 'internal scratch']
  %s0 = inlined_call_operand.vmem [shape: bf16[512,160], index: 0, kind: input, shape index: {}]
  %s1 = inlined_call_operand.vmem [shape: bf16[160,128], index: 1, kind: input, shape index: {}]
  %s2 = inlined_call_operand.vmem [shape: f32[1,128], index: 2, kind: input, shape index: {}]
  %s3 = inlined_call_operand.hbm [shape: bf16[512,128], index: 3, kind: output, shape index: {}]
  %s4 = sld [smem:[#allocation0]]
  $region45: #{tpu_custom_call.1} parent=0
    _
  %s6 = ssub.s32 1, %s4
  %s7 = scalar_select 0, %s6, %s4
  $region1: #{tpu_custom_call.1} parent=0
    #allocation2 [shape = 'u8[131072]{0}', space=vmem, size = 0x20000, scoped, tag = 'output window, operand 0']
    #allocation3 [shape = 's32[2]{0}', space=sflag, size = 0x8, scoped, tag = 'scoped memory for tpu_custom_call.1']
    %8 = vsyncpa [#allocation3], 0
    %s9 = scalar_lea.sflag [#allocation3], 1
    %10 = vsyncpa %s9, 0
    loop: start=0, step=1, limit=4
    $region2: #{tpu_custom_call.1} parent=1 // loop_pre_header
      _
    $region3: #{tpu_custom_call.1} parent=1 // loop_header
      %s12 = sphi 0, %s16
      %p13 = scmp.ge.s32.totalorder %s12, 4
      %s22 = sphi 0, %s24
      %s25 = sphi 0, %s22
      %s26 = sphi 0, %s25
      %s42 = sphi 0, %s26
      %s46 = sphi 0, %s46
      %s48 = sphi 0, %s46
      %s49 = sphi 0, %s48
      %s63 = sphi 0, %s49
      %s67 = sphi 0, %s67
      %s69 = sphi 0, %s67
      %s70 = sphi 0, %s69
      %s84 = sphi 0, %s70
      %s90 = sphi 0, %s92
      %s93 = sphi 0, %s90
      %s94 = sphi 0, %s93
      %s110 = sphi 0, %s94
    $region4: #{tpu_custom_call.1} parent=1 // loop_header_branch
      %15 = sbr.rel (%p13) target = $region8
    $region5: #{tpu_custom_call.1} parent=1 // loop_body
      %s17 = ssub.s32 %s12, 1
      %s18 = ssub.s32 %s12, 2
      %s19 = sadd.s32 %s12, 1
      %s20 = ssub.s32 %s12, %s19
      %p21 = scmp.eq.s32.totalorder %s20, 0
      %s23 = sadd.s32 %s22, 1
      %s24 = scalar_select %p21, %s22, %s23
      %p27 = pneg %p21
      %p28 = scmp.eq.s32.totalorder %s12, 1
      %p29 = por %p27, %p28
      %p30 = scmp.ne.s32.totalorder %s22, %s25
      %p31 = scmp.eq.s32.totalorder %s12, 0
      %p32 = por %p30, %p31
      %p33 = scmp.ne.s32.totalorder %s22, %s25
      %p34 = scmp.eq.s32.totalorder %s17, 1
      %p35 = por %p33, %p34
      %p36 = scmp.ne.s32.totalorder %s25, %s26
      %p37 = scmp.eq.s32.totalorder %s17, 0
      %p38 = por %p36, %p37
      %p39 = scmp.ne.s32.totalorder %s25, %s26
      %p40 = scmp.eq.s32.totalorder %s18, 1
      %p41 = por %p39, %p40
      %p43 = scmp.ne.s32.totalorder %s26, %s42
      %p44 = scmp.eq.s32.totalorder %s18, 0
      %p45 = por %p43, %p44
      %s47 = sadd.s32 %s46, 1
      %p50 = scmp.eq.s32.totalorder %s12, 1
      %p51 = scmp.ne.s32.totalorder %s46, %s48
      %p52 = scmp.eq.s32.totalorder %s12, 0
      %p53 = por %p51, %p52
      %p54 = scmp.ne.s32.totalorder %s46, %s48
      %p55 = scmp.eq.s32.totalorder %s17, 1
      %p56 = por %p54, %p55
      %p57 = scmp.ne.s32.totalorder %s48, %s49
      %p58 = scmp.eq.s32.totalorder %s17, 0
      %p59 = por %p57, %p58
      %p60 = scmp.ne.s32.totalorder %s48, %s49
      %p61 = scmp.eq.s32.totalorder %s18, 1
      %p62 = por %p60, %p61
      %p64 = scmp.ne.s32.totalorder %s49, %s63
      %p65 = scmp.eq.s32.totalorder %s18, 0
      %p66 = por %p64, %p65
      %s68 = sadd.s32 %s67, 1
      %p71 = scmp.eq.s32.totalorder %s12, 1
      %p72 = scmp.ne.s32.totalorder %s67, %s69
      %p73 = scmp.eq.s32.totalorder %s12, 0
      %p74 = por %p72, %p73
      %p75 = scmp.ne.s32.totalorder %s67, %s69
      %p76 = scmp.eq.s32.totalorder %s17, 1
      %p77 = por %p75, %p76
      %p78 = scmp.ne.s32.totalorder %s69, %s70
      %p79 = scmp.eq.s32.totalorder %s17, 0
      %p80 = por %p78, %p79
      %p81 = scmp.ne.s32.totalorder %s69, %s70
      %p82 = scmp.eq.s32.totalorder %s18, 1
      %p83 = por %p81, %p82
      %p85 = scmp.ne.s32.totalorder %s70, %s84
      %p86 = scmp.eq.s32.totalorder %s18, 0
      %p87 = por %p85, %p86
      %s88 = ssub.s32 %s12, %s19
      %p89 = scmp.eq.s32.totalorder %s88, 0
      %s91 = sadd.s32 %s90, 1
      %s92 = scalar_select %p89, %s90, %s91
      %p95 = pneg %p89
      %p96 = scmp.eq.s32.totalorder %s12, 1
      %p97 = por %p95, %p96
      %p98 = scmp.ne.s32.totalorder %s90, %s93
      %p99 = scmp.eq.s32.totalorder %s12, 0
      %p100 = por %p98, %p99
      %p101 = scmp.ne.s32.totalorder %s90, %s93
      %p102 = scmp.eq.s32.totalorder %s17, 1
      %p103 = por %p101, %p102
      %p104 = scmp.ne.s32.totalorder %s93, %s94
      %p105 = scmp.eq.s32.totalorder %s17, 0
      %p106 = por %p104, %p105
      %p107 = scmp.ne.s32.totalorder %s93, %s94
      %p108 = scmp.eq.s32.totalorder %s18, 1
      %p109 = por %p107, %p108
      %p111 = scmp.ne.s32.totalorder %s94, %s110
      %p112 = scmp.eq.s32.totalorder %s18, 0
      %p113 = por %p111, %p112
      %p114 = scmp.le.s32.totalorder 1, %s12
      %p115 = scmp.lt.s32.totalorder %s12, 3
      %p116 = pnand %p114, %p115
      %p117 = pneg %p116
      // Predicated region
      $region9: #{tpu_custom_call.1} parent=5 // pred_check
        _
      $region10: #{tpu_custom_call.1} parent=5 // pred_check_branch
        %119 = sbr.rel (%p116) target = $region12
      $region11: #{tpu_custom_call.1} parent=5 // pred_region
        %s120 = ssub.s32 %s12, 1
        // Predicated region
        $region13: #{tpu_custom_call.1} parent=11 // pred_check
          %p121 = pneg %p59
        $region14: #{tpu_custom_call.1} parent=11 // pred_check_branch
          %123 = sbr.rel (%p121) target = $region16
        $region15: #{tpu_custom_call.1} parent=11 // pred_region
          _
        $region16: #{tpu_custom_call.1} parent=11 // pred_fallthru
          _
        // Predicated region
        $region17: #{tpu_custom_call.1} parent=11 // pred_check
          %p124 = pneg %p80
        $region18: #{tpu_custom_call.1} parent=11 // pred_check_branch
          %126 = sbr.rel (%p124) target = $region20
        $region19: #{tpu_custom_call.1} parent=11 // pred_region
          _
        $region20: #{tpu_custom_call.1} parent=11 // pred_fallthru
          _
      $region12: #{tpu_custom_call.1} parent=5 // pred_fallthru
        _
      %p127 = scmp.lt.s32.totalorder %s12, 2
      // Predicated region
      $region21: #{tpu_custom_call.1} parent=5 // pred_check
        %p128 = pneg %p127
      $region22: #{tpu_custom_call.1} parent=5 // pred_check_branch
        %130 = sbr.rel (%p128) target = $region24
      $region23: #{tpu_custom_call.1} parent=5 // pred_region
        // Predicated region
        $region25: #{tpu_custom_call.1} parent=23 // pred_check
          %p131 = pneg %p32
        $region26: #{tpu_custom_call.1} parent=23 // pred_check_branch
          %133 = sbr.rel (%p131) target = $region28
        $region27: #{tpu_custom_call.1} parent=23 // pred_region
          %s134 = smul.u32 32, %s12
          %p135 = scmp.lt.s32.totalorder %s134, 63
          %s136 = scalar_select %p135, %s134, 63
          %s137 = smul.addr %s136, 2
          %s138 = smul.addr %s137, 4
          %s139 = scalar_lea.vmem %s0, %s138
          %s140 = smul.u32 32, %s12
        $region28: #{tpu_custom_call.1} parent=23 // pred_fallthru
          _
      $region24: #{tpu_custom_call.1} parent=5 // pred_fallthru
        _
      %p141 = scmp.le.s32.totalorder 1, %s12
      %p142 = scmp.lt.s32.totalorder %s12, 3
      %p143 = pnand %p141, %p142
      %p144 = pneg %p143
      // Predicated region
      $region29: #{tpu_custom_call.1} parent=5 // pred_check
        _
      $region30: #{tpu_custom_call.1} parent=5 // pred_check_branch
        %146 = sbr.rel (%p143) target = $region32
      $region31: #{tpu_custom_call.1} parent=5 // pred_region
        %s147 = ssub.s32 %s12, 1
        %s148 = smul.u32 32, %s17
        %p149 = scmp.lt.s32.totalorder %s148, 63
        %s150 = scalar_select %p149, %s148, 63
        %s151 = smul.addr %s150, 2
        %s152 = smul.addr %s151, 4
        %s153 = scalar_lea.vmem %s0, %s152
        %p154 = pneg %p38
        %p155 = pneg %p35
        %p156 = pneg %p59
        %p157 = pneg %p56
        %p158 = pneg %p80
        %p159 = pneg %p77
        %p160 = pneg %p106
        %p161 = pneg %p103
        %s162 = sand.u32 %s93, 1
        %s163 = scalar_lea.sflag [#allocation3], %s162
        %s164 = sand.u32 %s93, 1
        %s165 = smul.addr %s164, 128
        %s166 = scalar_lea.vmem [#allocation2], %s165
        %s167 = smul.u32 32, %s17
        %p168 = scmp.lt.s32.totalorder %s167, 63
        %s169 = scalar_select %p168, %s167, 63
        %s170 = smul.addr %s169, 2
        %s171 = smul.addr %s170, 4
        %s172 = scalar_lea.vmem %s0, %s171
        %s173 = smul.u32 32, %s17
        %s174 = smul.u32 32, %s17
        %v176 = vld [vmem:[%s172] sm:$0xff]
        %v177 = vld [vmem:[%s172 + $0x8] sm:$0xff]
        %v178 = vld [vmem:[%s172 + $0x10] sm:$0xff]
        %v179 = vld [vmem:[%s172 + $0x18] sm:$0xff]
        %v180 = vld [vmem:[%s172 + $0x20] sm:$0xff]
        %v181 = vld [vmem:[%s172 + $0x28] sm:$0xff]
        %v182 = vld [vmem:[%s172 + $0x30] sm:$0xff]
        %v183 = vld [vmem:[%s172 + $0x38] sm:$0xff]
        %v184 = vld [vmem:[%s172 + $0x40] sm:$0xff]
        %v185 = vld [vmem:[%s172 + $0x48] sm:$0xff]
        %v186 = vld [vmem:[%s172 + $0x50] sm:$0xff]
        %v187 = vld [vmem:[%s172 + $0x58] sm:$0xff]
        %v188 = vld [vmem:[%s172 + $0x60] sm:$0xff]
        %v189 = vld [vmem:[%s172 + $0x68] sm:$0xff]
        %v190 = vld [vmem:[%s172 + $0x70] sm:$0xff]
        %v191 = vld [vmem:[%s172 + $0x78] sm:$0xff]
        %v192 = vld [vmem:[%s172 + $0x80] sm:$0xff]
        %v193 = vld [vmem:[%s172 + $0x88] sm:$0xff]
        %v194 = vld [vmem:[%s172 + $0x90] sm:$0xff]
        %v195 = vld [vmem:[%s172 + $0x98] sm:$0xff]
        %v196 = vld [vmem:[%s172 + $0xa0] sm:$0xff]
        %v197 = vld [vmem:[%s172 + $0xa8] sm:$0xff]
        %v198 = vld [vmem:[%s172 + $0xb0] sm:$0xff]
        %v199 = vld [vmem:[%s172 + $0xb8] sm:$0xff]
        %v200 = vld [vmem:[%s172 + $0xc0] sm:$0xff]
        %v201 = vld [vmem:[%s172 + $0xc8] sm:$0xff]
        %v202 = vld [vmem:[%s172 + $0xd0] sm:$0xff]
        %v203 = vld [vmem:[%s172 + $0xd8] sm:$0xff]
        %v204 = vld [vmem:[%s172 + $0xe0] sm:$0xff]
        %v205 = vld [vmem:[%s172 + $0xe8] sm:$0xff]
        %v206 = vld [vmem:[%s172 + $0xf0] sm:$0xff]
        %v207 = vld [vmem:[%s172 + $0xf8] sm:$0xff]
        %v208 = vld [vmem:[%s1] sm:$0xf]
        %v209 = vld [vmem:[%s1 + $0x4] sm:$0xf]
        %v210 = vld [vmem:[%s1 + $0x8] sm:$0xf]
        %v211 = vld [vmem:[%s1 + $0xc] sm:$0xf]
        %v212 = vld [vmem:[%s1 + $0x10] sm:$0xf]
        %v213 = vld [vmem:[%s1 + $0x14] sm:$0xf]
        %v214 = vld [vmem:[%s1 + $0x18] sm:$0xf]
        %v215 = vld [vmem:[%s1 + $0x1c] sm:$0xf]
        %v216 = vld [vmem:[%s1 + $0x20] sm:$0xf]
        %v217 = vld [vmem:[%s1 + $0x24] sm:$0xf]
        %v218 = vld [vmem:[%s1 + $0x28] sm:$0xf]
        %v219 = vld [vmem:[%s1 + $0x2c] sm:$0xf]
        %v220 = vld [vmem:[%s1 + $0x30] sm:$0xf]
        %v221 = vld [vmem:[%s1 + $0x34] sm:$0xf]
        %v222 = vld [vmem:[%s1 + $0x38] sm:$0xf]
        %v223 = vld [vmem:[%s1 + $0x3c] sm:$0xf]
        %v224 = vld [vmem:[%s1 + $0x40] sm:$0xf]
        %v225 = vld [vmem:[%s1 + $0x44] sm:$0xf]
        %v226 = vld [vmem:[%s1 + $0x48] sm:$0xf]
        %v227 = vld [vmem:[%s1 + $0x4c] sm:$0xf]
        %v228 = vld [vmem:[%s2] sm:$0x1]
        %v230 = vlaneseq
        %v231 = vshrl.u32 %v230, 7
        %v232 = vsub.s32 0, %v231
        %v233 = vrot.slane %v228, %v232
        %v267 = vunpack.c.l.b16 %v176
        %v268 = vunpack.c.h.b16 %v176
        %v269 = vunpack.c.l.b16 %v177
        %v270 = vunpack.c.h.b16 %v177
        %v271 = vunpack.c.l.b16 %v178
        %v272 = vunpack.c.h.b16 %v178
        %v273 = vunpack.c.l.b16 %v179
        %v274 = vunpack.c.h.b16 %v179
        %v275 = vunpack.c.l.b16 %v180
        %v276 = vunpack.c.h.b16 %v180
        %v277 = vunpack.c.l.b16 %v181
        %v278 = vunpack.c.h.b16 %v181
        %v279 = vunpack.c.l.b16 %v182
        %v280 = vunpack.c.h.b16 %v182
        %v281 = vunpack.c.l.b16 %v183
        %v282 = vunpack.c.h.b16 %v183
        %v283 = vunpack.c.l.b16 %v184
        %v284 = vunpack.c.h.b16 %v184
        %v285 = vunpack.c.l.b16 %v185
        %v286 = vunpack.c.h.b16 %v185
        %v287 = vunpack.c.l.b16 %v186
        %v288 = vunpack.c.h.b16 %v186
        %v289 = vunpack.c.l.b16 %v187
        %v290 = vunpack.c.h.b16 %v187
        %v291 = vunpack.c.l.b16 %v188
        %v292 = vunpack.c.h.b16 %v188
        %v293 = vunpack.c.l.b16 %v189
        %v294 = vunpack.c.h.b16 %v189
        %v295 = vunpack.c.l.b16 %v190
        %v296 = vunpack.c.h.b16 %v190
        %v297 = vunpack.c.l.b16 %v191
        %v298 = vunpack.c.h.b16 %v191
        %v299 = vunpack.c.l.b16 %v192
        %v300 = vunpack.c.h.b16 %v192
        %v301 = vunpack.c.l.b16 %v193
        %v302 = vunpack.c.h.b16 %v193
        %v303 = vunpack.c.l.b16 %v194
        %v304 = vunpack.c.h.b16 %v194
        %v305 = vunpack.c.l.b16 %v195
        %v306 = vunpack.c.h.b16 %v195
        %v307 = vunpack.c.l.b16 %v196
        %v308 = vunpack.c.h.b16 %v196
        %v309 = vunpack.c.l.b16 %v197
        %v310 = vunpack.c.h.b16 %v197
        %v311 = vunpack.c.l.b16 %v198
        %v312 = vunpack.c.h.b16 %v198
        %v313 = vunpack.c.l.b16 %v199
        %v314 = vunpack.c.h.b16 %v199
        %v315 = vunpack.c.l.b16 %v200
        %v316 = vunpack.c.h.b16 %v200
        %v317 = vunpack.c.l.b16 %v201
        %v318 = vunpack.c.h.b16 %v201
        %v319 = vunpack.c.l.b16 %v202
        %v320 = vunpack.c.h.b16 %v202
        %v321 = vunpack.c.l.b16 %v203
        %v322 = vunpack.c.h.b16 %v203
        %v323 = vunpack.c.l.b16 %v204
        %v324 = vunpack.c.h.b16 %v204
        %v325 = vunpack.c.l.b16 %v205
        %v326 = vunpack.c.h.b16 %v205
        %v327 = vunpack.c.l.b16 %v206
        %v328 = vunpack.c.h.b16 %v206
        %v329 = vunpack.c.l.b16 %v207
        %v330 = vunpack.c.h.b16 %v207
        %v331 = vpack.c.b16 %v269, %v267
        %v332 = vpack.c.b16 %v270, %v268
        %v333 = vpack.c.b16 %v273, %v271
        %v334 = vpack.c.b16 %v274, %v272
        %v335 = vpack.c.b16 %v277, %v275
        %v336 = vpack.c.b16 %v278, %v276
        %v337 = vpack.c.b16 %v281, %v279
        %v338 = vpack.c.b16 %v282, %v280
        %v339 = vpack.c.b16 %v285, %v283
        %v340 = vpack.c.b16 %v286, %v284
        %v341 = vpack.c.b16 %v289, %v287
        %v342 = vpack.c.b16 %v290, %v288
        %v343 = vpack.c.b16 %v293, %v291
        %v344 = vpack.c.b16 %v294, %v292
        %v345 = vpack.c.b16 %v297, %v295
        %v346 = vpack.c.b16 %v298, %v296
        %v347 = vpack.c.b16 %v301, %v299
        %v348 = vpack.c.b16 %v302, %v300
        %v349 = vpack.c.b16 %v305, %v303
        %v350 = vpack.c.b16 %v306, %v304
        %v351 = vpack.c.b16 %v309, %v307
        %v352 = vpack.c.b16 %v310, %v308
        %v353 = vpack.c.b16 %v313, %v311
        %v354 = vpack.c.b16 %v314, %v312
        %v355 = vpack.c.b16 %v317, %v315
        %v356 = vpack.c.b16 %v318, %v316
        %v357 = vpack.c.b16 %v321, %v319
        %v358 = vpack.c.b16 %v322, %v320
        %v359 = vpack.c.b16 %v325, %v323
        %v360 = vpack.c.b16 %v326, %v324
        %v361 = vpack.c.b16 %v329, %v327
        %v362 = vpack.c.b16 %v330, %v328
        %v399 = vunpack.c.l.b16 %v208
        %v400 = vunpack.c.l.b16 %v209
        %v401 = vunpack.c.l.b16 %v210
        %v402 = vunpack.c.l.b16 %v211
        %v403 = vunpack.c.l.b16 %v212
        %v404 = vunpack.c.l.b16 %v213
        %v405 = vunpack.c.l.b16 %v214
        %v406 = vunpack.c.l.b16 %v215
        %v407 = vunpack.c.l.b16 %v216
        %v408 = vunpack.c.l.b16 %v217
        %v409 = vunpack.c.l.b16 %v218
        %v410 = vunpack.c.l.b16 %v219
        %v411 = vunpack.c.l.b16 %v220
        %v412 = vunpack.c.l.b16 %v221
        %v413 = vunpack.c.l.b16 %v222
        %v414 = vunpack.c.l.b16 %v223
        %v415 = vunpack.c.l.b16 %v224
        %v416 = vunpack.c.l.b16 %v225
        %v417 = vunpack.c.l.b16 %v226
        %v418 = vunpack.c.l.b16 %v227
        %v419 = vpack.c.b16 %v400, %v399
        %v420 = vpack.c.b16 %v402, %v401
        %v421 = vpack.c.b16 %v404, %v403
        %v422 = vpack.c.b16 %v406, %v405
        %v423 = vpack.c.b16 %v408, %v407
        %v424 = vpack.c.b16 %v410, %v409
        %v425 = vpack.c.b16 %v412, %v411
        %v426 = vpack.c.b16 %v414, %v413
        %v427 = vpack.c.b16 %v416, %v415
        %v428 = vpack.c.b16 %v418, %v417
        %vm439 = vcmask 261120
        %v441 = vsel %vm439, %v332, 0
        %v444 = vsel %vm439, %v334, 0
        %v447 = vsel %vm439, %v336, 0
        %v450 = vsel %vm439, %v338, 0
        %v453 = vsel %vm439, %v340, 0
        %v456 = vsel %vm439, %v342, 0
        %v459 = vsel %vm439, %v344, 0
        %v462 = vsel %vm439, %v346, 0
        %v465 = vsel %vm439, %v348, 0
        %v468 = vsel %vm439, %v350, 0
        %v471 = vsel %vm439, %v352, 0
        %v474 = vsel %vm439, %v354, 0
        %v477 = vsel %vm439, %v356, 0
        %v480 = vsel %vm439, %v358, 0
        %v483 = vsel %vm439, %v360, 0
        %v486 = vsel %vm439, %v362, 0
        %488 = vmatprep.subr.bf16.mxu0 0
        %489 = vmatpush1.bf16.msra.mxu0 %v426
        %490 = vmatprep.subr.bf16.mxu0 0
        %491 = vmatpush1.bf16.msra.mxu0 %v425
        %492 = vmatprep.subr.bf16.mxu0 0
        %493 = vmatpush1.bf16.msra.mxu0 %v424
        %494 = vmatprep.subr.bf16.mxu0 0
        %495 = vmatpush1.bf16.msra.mxu0 %v423
        %496 = vmatprep.subr.bf16.mxu0 0
        %497 = vmatpush1.bf16.msra.mxu0 %v422
        %498 = vmatprep.subr.bf16.mxu0 0
        %499 = vmatpush1.bf16.msra.mxu0 %v421
        %500 = vmatprep.subr.bf16.mxu0 0
        %501 = vmatpush1.bf16.msra.mxu0 %v420
        %502 = vmatprep.subr.bf16.mxu0 0
        %503 = vmatpush1.bf16.msra.mxu0 %v419
        %504 = vmatprep.subr.bf16.mxu0 0
        %505 = vmatpush2.bf16.msra.mxu0 0
        %506 = vmatprep.subr.bf16.mxu0 0
        %507 = vmatpush2.bf16.msra.mxu0 0
        %508 = vmatprep.subr.bf16.mxu0 0
        %509 = vmatpush2.bf16.msra.mxu0 0
        %510 = vmatprep.subr.bf16.mxu0 0
        %511 = vmatpush2.bf16.msra.mxu0 0
        %512 = vmatprep.subr.bf16.mxu0 0
        %513 = vmatpush2.bf16.msra.mxu0 0
        %514 = vmatprep.subr.bf16.mxu0 0
        %515 = vmatpush2.bf16.msra.mxu0 0
        %516 = vmatprep.subr.bf16.mxu0 0
        %517 = vmatpush2.bf16.msra.mxu0 %v428
        %518 = vmatprep.subr.bf16.mxu0 0
        %519 = vmatpush2.bf16.msra.mxu0 %v427
        %520 = vmatprep.mubr.bf16.mxu0 %v441
        %521 = vmatmul.mubr.bf16.gmra.mxu0 %v331
        %v522 = vpop.f32.mrf.mxu0
        %v523 = vadd.f32 %v233, %v522
        %v524 = vpop.f32.mrf.mxu0
        %v525 = vpop.f32.mrf.mxu0
        %v526 = vadd.f32 %v233, %v525
        %v527 = vpop.f32.mrf.mxu0
        %528 = vmatprep.mubr.bf16.mxu0 %v444
        %529 = vmatmul.mubr.bf16.gmra.mxu0 %v333
        %v530 = vpop.f32.mrf.mxu0
        %v531 = vadd.f32 %v233, %v530
        %v532 = vpop.f32.mrf.mxu0
        %v533 = vpop.f32.mrf.mxu0
        %v534 = vadd.f32 %v233, %v533
        %v535 = vpop.f32.mrf.mxu0
        %536 = vmatprep.mubr.bf16.mxu0 %v447
        %537 = vmatmul.mubr.bf16.gmra.mxu0 %v335
        %v538 = vpop.f32.mrf.mxu0
        %v539 = vadd.f32 %v233, %v538
        %v540 = vpop.f32.mrf.mxu0
        %v541 = vpop.f32.mrf.mxu0
        %v542 = vadd.f32 %v233, %v541
        %v543 = vpop.f32.mrf.mxu0
        %544 = vmatprep.mubr.bf16.mxu0 %v450
        %545 = vmatmul.mubr.bf16.gmra.mxu0 %v337
        %v546 = vpop.f32.mrf.mxu0
        %v547 = vadd.f32 %v233, %v546
        %v548 = vpop.f32.mrf.mxu0
        %v549 = vpop.f32.mrf.mxu0
        %v550 = vadd.f32 %v233, %v549
        %v551 = vpop.f32.mrf.mxu0
        %552 = vmatprep.mubr.bf16.mxu0 %v453
        %553 = vmatmul.mubr.bf16.gmra.mxu0 %v339
        %v554 = vpop.f32.mrf.mxu0
        %v555 = vadd.f32 %v233, %v554
        %v556 = vpop.f32.mrf.mxu0
        %v557 = vpop.f32.mrf.mxu0
        %v558 = vadd.f32 %v233, %v557
        %v559 = vpop.f32.mrf.mxu0
        %560 = vmatprep.mubr.bf16.mxu0 %v456
        %561 = vmatmul.mubr.bf16.gmra.mxu0 %v341
        %v562 = vpop.f32.mrf.mxu0
        %v563 = vadd.f32 %v233, %v562
        %v564 = vpop.f32.mrf.mxu0
        %v565 = vpop.f32.mrf.mxu0
        %v566 = vadd.f32 %v233, %v565
        %v567 = vpop.f32.mrf.mxu0
        %568 = vmatprep.mubr.bf16.mxu0 %v459
        %569 = vmatmul.mubr.bf16.gmra.mxu0 %v343
        %v570 = vpop.f32.mrf.mxu0
        %v571 = vadd.f32 %v233, %v570
        %v572 = vpop.f32.mrf.mxu0
        %v573 = vpop.f32.mrf.mxu0
        %v574 = vadd.f32 %v233, %v573
        %v575 = vpop.f32.mrf.mxu0
        %576 = vmatprep.mubr.bf16.mxu0 %v462
        %577 = vmatmul.mubr.bf16.gmra.mxu0 %v345
        %v578 = vpop.f32.mrf.mxu0
        %v579 = vadd.f32 %v233, %v578
        %v580 = vpop.f32.mrf.mxu0
        %v581 = vpop.f32.mrf.mxu0
        %v582 = vadd.f32 %v233, %v581
        %v583 = vpop.f32.mrf.mxu0
        %584 = vmatprep.mubr.bf16.mxu0 %v465
        %585 = vmatmul.mubr.bf16.gmra.mxu0 %v347
        %v586 = vpop.f32.mrf.mxu0
        %v587 = vadd.f32 %v233, %v586
        %v588 = vpop.f32.mrf.mxu0
        %v589 = vpop.f32.mrf.mxu0
        %v590 = vadd.f32 %v233, %v589
        %v591 = vpop.f32.mrf.mxu0
        %592 = vmatprep.mubr.bf16.mxu0 %v468
        %593 = vmatmul.mubr.bf16.gmra.mxu0 %v349
        %v594 = vpop.f32.mrf.mxu0
        %v595 = vadd.f32 %v233, %v594
        %v596 = vpop.f32.mrf.mxu0
        %v597 = vpop.f32.mrf.mxu0
        %v598 = vadd.f32 %v233, %v597
        %v599 = vpop.f32.mrf.mxu0
        %600 = vmatprep.mubr.bf16.mxu0 %v471
        %601 = vmatmul.mubr.bf16.gmra.mxu0 %v351
        %v602 = vpop.f32.mrf.mxu0
        %v603 = vadd.f32 %v233, %v602
        %v604 = vpop.f32.mrf.mxu0
        %v605 = vpop.f32.mrf.mxu0
        %v606 = vadd.f32 %v233, %v605
        %v607 = vpop.f32.mrf.mxu0
        %608 = vmatprep.mubr.bf16.mxu0 %v474
        %609 = vmatmul.mubr.bf16.gmra.mxu0 %v353
        %v610 = vpop.f32.mrf.mxu0
        %v611 = vadd.f32 %v233, %v610
        %v612 = vpop.f32.mrf.mxu0
        %v613 = vpop.f32.mrf.mxu0
        %v614 = vadd.f32 %v233, %v613
        %v615 = vpop.f32.mrf.mxu0
        %616 = vmatprep.mubr.bf16.mxu0 %v477
        %617 = vmatmul.mubr.bf16.gmra.mxu0 %v355
        %v618 = vpop.f32.mrf.mxu0
        %v619 = vadd.f32 %v233, %v618
        %v620 = vpop.f32.mrf.mxu0
        %v621 = vpop.f32.mrf.mxu0
        %v622 = vadd.f32 %v233, %v621
        %v623 = vpop.f32.mrf.mxu0
        %624 = vmatprep.mubr.bf16.mxu0 %v480
        %625 = vmatmul.mubr.bf16.gmra.mxu0 %v357
        %v626 = vpop.f32.mrf.mxu0
        %v627 = vadd.f32 %v233, %v626
        %v628 = vpop.f32.mrf.mxu0
        %v629 = vpop.f32.mrf.mxu0
        %v630 = vadd.f32 %v233, %v629
        %v631 = vpop.f32.mrf.mxu0
        %632 = vmatprep.mubr.bf16.mxu0 %v483
        %633 = vmatmul.mubr.bf16.gmra.mxu0 %v359
        %v634 = vpop.f32.mrf.mxu0
        %v635 = vadd.f32 %v233, %v634
        %v636 = vpop.f32.mrf.mxu0
        %v637 = vpop.f32.mrf.mxu0
        %v638 = vadd.f32 %v233, %v637
        %v639 = vpop.f32.mrf.mxu0
        %640 = vmatprep.mubr.bf16.mxu0 %v486
        %641 = vmatmul.mubr.bf16.gmra.mxu0 %v361
        %v642 = vpop.f32.mrf.mxu0
        %v643 = vadd.f32 %v233, %v642
        %v644 = vpop.f32.mrf.mxu0
        %v645 = vpop.f32.mrf.mxu0
        %v646 = vadd.f32 %v233, %v645
        %v647 = vpop.f32.mrf.mxu0
        %648 = vdwg.mxu0
        %v649 = vmul.f32 %v523, %v523
        %v650 = vmul.f32 %v526, %v526
        %v651 = vmul.f32 %v531, %v531
        %v652 = vmul.f32 %v534, %v534
        %v653 = vmul.f32 %v539, %v539
        %v654 = vmul.f32 %v542, %v542
        %v655 = vmul.f32 %v547, %v547
        %v656 = vmul.f32 %v550, %v550
        %v657 = vmul.f32 %v555, %v555
        %v658 = vmul.f32 %v558, %v558
        %v659 = vmul.f32 %v563, %v563
        %v660 = vmul.f32 %v566, %v566
        %v661 = vmul.f32 %v571, %v571
        %v662 = vmul.f32 %v574, %v574
        %v663 = vmul.f32 %v579, %v579
        %v664 = vmul.f32 %v582, %v582
        %v665 = vmul.f32 %v587, %v587
        %v666 = vmul.f32 %v590, %v590
        %v667 = vmul.f32 %v595, %v595
        %v668 = vmul.f32 %v598, %v598
        %v669 = vmul.f32 %v603, %v603
        %v670 = vmul.f32 %v606, %v606
        %v671 = vmul.f32 %v611, %v611
        %v672 = vmul.f32 %v614, %v614
        %v673 = vmul.f32 %v619, %v619
        %v674 = vmul.f32 %v622, %v622
        %v675 = vmul.f32 %v627, %v627
        %v676 = vmul.f32 %v630, %v630
        %v677 = vmul.f32 %v635, %v635
        %v678 = vmul.f32 %v638, %v638
        %v679 = vmul.f32 %v643, %v643
        %v680 = vmul.f32 %v646, %v646
        %681 = vadd.xlane.f32.xlu0 %v649
        %v682 = vpop.xlane.xlu0 %681
        %683 = vadd.xlane.f32.xlu0 %v650
        %v684 = vpop.xlane.xlu0 %683
        %685 = vadd.xlane.f32.xlu0 %v651
        %v686 = vpop.xlane.xlu0 %685
        %687 = vadd.xlane.f32.xlu0 %v652
        %v688 = vpop.xlane.xlu0 %687
        %689 = vadd.xlane.f32.xlu0 %v653
        %v690 = vpop.xlane.xlu0 %689
        %691 = vadd.xlane.f32.xlu0 %v654
        %v692 = vpop.xlane.xlu0 %691
        %693 = vadd.xlane.f32.xlu0 %v655
        %v694 = vpop.xlane.xlu0 %693
        %695 = vadd.xlane.f32.xlu0 %v656
        %v696 = vpop.xlane.xlu0 %695
        %697 = vadd.xlane.f32.xlu0 %v657
        %v698 = vpop.xlane.xlu0 %697
        %699 = vadd.xlane.f32.xlu0 %v658
        %v700 = vpop.xlane.xlu0 %699
        %701 = vadd.xlane.f32.xlu0 %v659
        %v702 = vpop.xlane.xlu0 %701
        %703 = vadd.xlane.f32.xlu0 %v660
        %v704 = vpop.xlane.xlu0 %703
        %705 = vadd.xlane.f32.xlu0 %v661
        %v706 = vpop.xlane.xlu0 %705
        %707 = vadd.xlane.f32.xlu0 %v662
        %v708 = vpop.xlane.xlu0 %707
        %709 = vadd.xlane.f32.xlu0 %v663
        %v710 = vpop.xlane.xlu0 %709
        %711 = vadd.xlane.f32.xlu0 %v664
        %v712 = vpop.xlane.xlu0 %711
        %713 = vadd.xlane.f32.xlu0 %v665
        %v714 = vpop.xlane.xlu0 %713
        %715 = vadd.xlane.f32.xlu0 %v666
        %v716 = vpop.xlane.xlu0 %715
        %717 = vadd.xlane.f32.xlu0 %v667
        %v718 = vpop.xlane.xlu0 %717
        %719 = vadd.xlane.f32.xlu0 %v668
        %v720 = vpop.xlane.xlu0 %719
        %721 = vadd.xlane.f32.xlu0 %v669
        %v722 = vpop.xlane.xlu0 %721
        %723 = vadd.xlane.f32.xlu0 %v670
        %v724 = vpop.xlane.xlu0 %723
        %725 = vadd.xlane.f32.xlu0 %v671
        %v726 = vpop.xlane.xlu0 %725
        %727 = vadd.xlane.f32.xlu0 %v672
        %v728 = vpop.xlane.xlu0 %727
        %729 = vadd.xlane.f32.xlu0 %v673
        %v730 = vpop.xlane.xlu0 %729
        %731 = vadd.xlane.f32.xlu0 %v674
        %v732 = vpop.xlane.xlu0 %731
        %733 = vadd.xlane.f32.xlu0 %v675
        %v734 = vpop.xlane.xlu0 %733
        %735 = vadd.xlane.f32.xlu0 %v676
        %v736 = vpop.xlane.xlu0 %735
        %737 = vadd.xlane.f32.xlu0 %v677
        %v738 = vpop.xlane.xlu0 %737
        %739 = vadd.xlane.f32.xlu0 %v678
        %v740 = vpop.xlane.xlu0 %739
        %741 = vadd.xlane.f32.xlu0 %v679
        %v742 = vpop.xlane.xlu0 %741
        %743 = vadd.xlane.f32.xlu0 %v680
        %v744 = vpop.xlane.xlu0 %743
        %v745 = vrsqrt.pop %v682
        %v746 = vmul.f32 %v682, %v745
        %vm747 = vcmp.eq.f32.partialorder %v682, inf
        %v748 = vsel %vm747, %v682, %v746
        %vm749 = vcmp.eq.f32.partialorder %v682, 0.0
        %v750 = vand.u32 %v682, 2147483648
        %v751 = vsel %vm749, %v750, %v748
        %v752 = vrsqrt.pop %v684
        %v753 = vmul.f32 %v684, %v752
        %vm754 = vcmp.eq.f32.partialorder %v684, inf
        %v755 = vsel %vm754, %v684, %v753
        %vm756 = vcmp.eq.f32.partialorder %v684, 0.0
        %v757 = vand.u32 %v684, 2147483648
        %v758 = vsel %vm756, %v757, %v755
        %v759 = vrsqrt.pop %v686
        %v760 = vmul.f32 %v686, %v759
        %vm761 = vcmp.eq.f32.partialorder %v686, inf
        %v762 = vsel %vm761, %v686, %v760
        %vm763 = vcmp.eq.f32.partialorder %v686, 0.0
        %v764 = vand.u32 %v686, 2147483648
        %v765 = vsel %vm763, %v764, %v762
        %v766 = vrsqrt.pop %v688
        %v767 = vmul.f32 %v688, %v766
        %vm768 = vcmp.eq.f32.partialorder %v688, inf
        %v769 = vsel %vm768, %v688, %v767
        %vm770 = vcmp.eq.f32.partialorder %v688, 0.0
        %v771 = vand.u32 %v688, 2147483648
        %v772 = vsel %vm770, %v771, %v769
        %v773 = vrsqrt.pop %v690
        %v774 = vmul.f32 %v690, %v773
        %vm775 = vcmp.eq.f32.partialorder %v690, inf
        %v776 = vsel %vm775, %v690, %v774
        %vm777 = vcmp.eq.f32.partialorder %v690, 0.0
        %v778 = vand.u32 %v690, 2147483648
        %v779 = vsel %vm777, %v778, %v776
        %v780 = vrsqrt.pop %v692
        %v781 = vmul.f32 %v692, %v780
        %vm782 = vcmp.eq.f32.partialorder %v692, inf
        %v783 = vsel %vm782, %v692, %v781
        %vm784 = vcmp.eq.f32.partialorder %v692, 0.0
        %v785 = vand.u32 %v692, 2147483648
        %v786 = vsel %vm784, %v785, %v783
        %v787 = vrsqrt.pop %v694
        %v788 = vmul.f32 %v694, %v787
        %vm789 = vcmp.eq.f32.partialorder %v694, inf
        %v790 = vsel %vm789, %v694, %v788
        %vm791 = vcmp.eq.f32.partialorder %v694, 0.0
        %v792 = vand.u32 %v694, 2147483648
        %v793 = vsel %vm791, %v792, %v790
        %v794 = vrsqrt.pop %v696
        %v795 = vmul.f32 %v696, %v794
        %vm796 = vcmp.eq.f32.partialorder %v696, inf
        %v797 = vsel %vm796, %v696, %v795
        %vm798 = vcmp.eq.f32.partialorder %v696, 0.0
        %v799 = vand.u32 %v696, 2147483648
        %v800 = vsel %vm798, %v799, %v797
        %v801 = vrsqrt.pop %v698
        %v802 = vmul.f32 %v698, %v801
        %vm803 = vcmp.eq.f32.partialorder %v698, inf
        %v804 = vsel %vm803, %v698, %v802
        %vm805 = vcmp.eq.f32.partialorder %v698, 0.0
        %v806 = vand.u32 %v698, 2147483648
        %v807 = vsel %vm805, %v806, %v804
        %v808 = vrsqrt.pop %v700
        %v809 = vmul.f32 %v700, %v808
        %vm810 = vcmp.eq.f32.partialorder %v700, inf
        %v811 = vsel %vm810, %v700, %v809
        %vm812 = vcmp.eq.f32.partialorder %v700, 0.0
        %v813 = vand.u32 %v700, 2147483648
        %v814 = vsel %vm812, %v813, %v811
        %v815 = vrsqrt.pop %v702
        %v816 = vmul.f32 %v702, %v815
        %vm817 = vcmp.eq.f32.partialorder %v702, inf
        %v818 = vsel %vm817, %v702, %v816
        %vm819 = vcmp.eq.f32.partialorder %v702, 0.0
        %v820 = vand.u32 %v702, 2147483648
        %v821 = vsel %vm819, %v820, %v818
        %v822 = vrsqrt.pop %v704
        %v823 = vmul.f32 %v704, %v822
        %vm824 = vcmp.eq.f32.partialorder %v704, inf
        %v825 = vsel %vm824, %v704, %v823
        %vm826 = vcmp.eq.f32.partialorder %v704, 0.0
        %v827 = vand.u32 %v704, 2147483648
        %v828 = vsel %vm826, %v827, %v825
        %v829 = vrsqrt.pop %v706
        %v830 = vmul.f32 %v706, %v829
        %vm831 = vcmp.eq.f32.partialorder %v706, inf
        %v832 = vsel %vm831, %v706, %v830
        %vm833 = vcmp.eq.f32.partialorder %v706, 0.0
        %v834 = vand.u32 %v706, 2147483648
        %v835 = vsel %vm833, %v834, %v832
        %v836 = vrsqrt.pop %v708
        %v837 = vmul.f32 %v708, %v836
        %vm838 = vcmp.eq.f32.partialorder %v708, inf
        %v839 = vsel %vm838, %v708, %v837
        %vm840 = vcmp.eq.f32.partialorder %v708, 0.0
        %v841 = vand.u32 %v708, 2147483648
        %v842 = vsel %vm840, %v841, %v839
        %v843 = vrsqrt.pop %v710
        %v844 = vmul.f32 %v710, %v843
        %vm845 = vcmp.eq.f32.partialorder %v710, inf
        %v846 = vsel %vm845, %v710, %v844
        %vm847 = vcmp.eq.f32.partialorder %v710, 0.0
        %v848 = vand.u32 %v710, 2147483648
        %v849 = vsel %vm847, %v848, %v846
        %v850 = vrsqrt.pop %v712
        %v851 = vmul.f32 %v712, %v850
        %vm852 = vcmp.eq.f32.partialorder %v712, inf
        %v853 = vsel %vm852, %v712, %v851
        %vm854 = vcmp.eq.f32.partialorder %v712, 0.0
        %v855 = vand.u32 %v712, 2147483648
        %v856 = vsel %vm854, %v855, %v853
        %v857 = vrsqrt.pop %v714
        %v858 = vmul.f32 %v714, %v857
        %vm859 = vcmp.eq.f32.partialorder %v714, inf
        %v860 = vsel %vm859, %v714, %v858
        %vm861 = vcmp.eq.f32.partialorder %v714, 0.0
        %v862 = vand.u32 %v714, 2147483648
        %v863 = vsel %vm861, %v862, %v860
        %v864 = vrsqrt.pop %v716
        %v865 = vmul.f32 %v716, %v864
        %vm866 = vcmp.eq.f32.partialorder %v716, inf
        %v867 = vsel %vm866, %v716, %v865
        %vm868 = vcmp.eq.f32.partialorder %v716, 0.0
        %v869 = vand.u32 %v716, 2147483648
        %v870 = vsel %vm868, %v869, %v867
        %v871 = vrsqrt.pop %v718
        %v872 = vmul.f32 %v718, %v871
        %vm873 = vcmp.eq.f32.partialorder %v718, inf
        %v874 = vsel %vm873, %v718, %v872
        %vm875 = vcmp.eq.f32.partialorder %v718, 0.0
        %v876 = vand.u32 %v718, 2147483648
        %v877 = vsel %vm875, %v876, %v874
        %v878 = vrsqrt.pop %v720
        %v879 = vmul.f32 %v720, %v878
        %vm880 = vcmp.eq.f32.partialorder %v720, inf
        %v881 = vsel %vm880, %v720, %v879
        %vm882 = vcmp.eq.f32.partialorder %v720, 0.0
        %v883 = vand.u32 %v720, 2147483648
        %v884 = vsel %vm882, %v883, %v881
        %v885 = vrsqrt.pop %v722
        %v886 = vmul.f32 %v722, %v885
        %vm887 = vcmp.eq.f32.partialorder %v722, inf
        %v888 = vsel %vm887, %v722, %v886
        %vm889 = vcmp.eq.f32.partialorder %v722, 0.0
        %v890 = vand.u32 %v722, 2147483648
        %v891 = vsel %vm889, %v890, %v888
        %v892 = vrsqrt.pop %v724
        %v893 = vmul.f32 %v724, %v892
        %vm894 = vcmp.eq.f32.partialorder %v724, inf
        %v895 = vsel %vm894, %v724, %v893
        %vm896 = vcmp.eq.f32.partialorder %v724, 0.0
        %v897 = vand.u32 %v724, 2147483648
        %v898 = vsel %vm896, %v897, %v895
        %v899 = vrsqrt.pop %v726
        %v900 = vmul.f32 %v726, %v899
        %vm901 = vcmp.eq.f32.partialorder %v726, inf
        %v902 = vsel %vm901, %v726, %v900
        %vm903 = vcmp.eq.f32.partialorder %v726, 0.0
        %v904 = vand.u32 %v726, 2147483648
        %v905 = vsel %vm903, %v904, %v902
        %v906 = vrsqrt.pop %v728
        %v907 = vmul.f32 %v728, %v906
        %vm908 = vcmp.eq.f32.partialorder %v728, inf
        %v909 = vsel %vm908, %v728, %v907
        %vm910 = vcmp.eq.f32.partialorder %v728, 0.0
        %v911 = vand.u32 %v728, 2147483648
        %v912 = vsel %vm910, %v911, %v909
        %v913 = vrsqrt.pop %v730
        %v914 = vmul.f32 %v730, %v913
        %vm915 = vcmp.eq.f32.partialorder %v730, inf
        %v916 = vsel %vm915, %v730, %v914
        %vm917 = vcmp.eq.f32.partialorder %v730, 0.0
        %v918 = vand.u32 %v730, 2147483648
        %v919 = vsel %vm917, %v918, %v916
        %v920 = vrsqrt.pop %v732
        %v921 = vmul.f32 %v732, %v920
        %vm922 = vcmp.eq.f32.partialorder %v732, inf
        %v923 = vsel %vm922, %v732, %v921
        %vm924 = vcmp.eq.f32.partialorder %v732, 0.0
        %v925 = vand.u32 %v732, 2147483648
        %v926 = vsel %vm924, %v925, %v923
        %v927 = vrsqrt.pop %v734
        %v928 = vmul.f32 %v734, %v927
        %vm929 = vcmp.eq.f32.partialorder %v734, inf
        %v930 = vsel %vm929, %v734, %v928
        %vm931 = vcmp.eq.f32.partialorder %v734, 0.0
        %v932 = vand.u32 %v734, 2147483648
        %v933 = vsel %vm931, %v932, %v930
        %v934 = vrsqrt.pop %v736
        %v935 = vmul.f32 %v736, %v934
        %vm936 = vcmp.eq.f32.partialorder %v736, inf
        %v937 = vsel %vm936, %v736, %v935
        %vm938 = vcmp.eq.f32.partialorder %v736, 0.0
        %v939 = vand.u32 %v736, 2147483648
        %v940 = vsel %vm938, %v939, %v937
        %v941 = vrsqrt.pop %v738
        %v942 = vmul.f32 %v738, %v941
        %vm943 = vcmp.eq.f32.partialorder %v738, inf
        %v944 = vsel %vm943, %v738, %v942
        %vm945 = vcmp.eq.f32.partialorder %v738, 0.0
        %v946 = vand.u32 %v738, 2147483648
        %v947 = vsel %vm945, %v946, %v944
        %v948 = vrsqrt.pop %v740
        %v949 = vmul.f32 %v740, %v948
        %vm950 = vcmp.eq.f32.partialorder %v740, inf
        %v951 = vsel %vm950, %v740, %v949
        %vm952 = vcmp.eq.f32.partialorder %v740, 0.0
        %v953 = vand.u32 %v740, 2147483648
        %v954 = vsel %vm952, %v953, %v951
        %v955 = vrsqrt.pop %v742
        %v956 = vmul.f32 %v742, %v955
        %vm957 = vcmp.eq.f32.partialorder %v742, inf
        %v958 = vsel %vm957, %v742, %v956
        %vm959 = vcmp.eq.f32.partialorder %v742, 0.0
        %v960 = vand.u32 %v742, 2147483648
        %v961 = vsel %vm959, %v960, %v958
        %v962 = vrsqrt.pop %v744
        %v963 = vmul.f32 %v744, %v962
        %vm964 = vcmp.eq.f32.partialorder %v744, inf
        %v965 = vsel %vm964, %v744, %v963
        %vm966 = vcmp.eq.f32.partialorder %v744, 0.0
        %v967 = vand.u32 %v744, 2147483648
        %v968 = vsel %vm966, %v967, %v965
        %v969 = vmax.f32 %v751, 1e-12
        %v970 = vmax.f32 %v758, 1e-12
        %v971 = vmax.f32 %v765, 1e-12
        %v972 = vmax.f32 %v772, 1e-12
        %v973 = vmax.f32 %v779, 1e-12
        %v974 = vmax.f32 %v786, 1e-12
        %v975 = vmax.f32 %v793, 1e-12
        %v976 = vmax.f32 %v800, 1e-12
        %v977 = vmax.f32 %v807, 1e-12
        %v978 = vmax.f32 %v814, 1e-12
        %v979 = vmax.f32 %v821, 1e-12
        %v980 = vmax.f32 %v828, 1e-12
        %v981 = vmax.f32 %v835, 1e-12
        %v982 = vmax.f32 %v842, 1e-12
        %v983 = vmax.f32 %v849, 1e-12
        %v984 = vmax.f32 %v856, 1e-12
        %v985 = vmax.f32 %v863, 1e-12
        %v986 = vmax.f32 %v870, 1e-12
        %v987 = vmax.f32 %v877, 1e-12
        %v988 = vmax.f32 %v884, 1e-12
        %v989 = vmax.f32 %v891, 1e-12
        %v990 = vmax.f32 %v898, 1e-12
        %v991 = vmax.f32 %v905, 1e-12
        %v992 = vmax.f32 %v912, 1e-12
        %v993 = vmax.f32 %v919, 1e-12
        %v994 = vmax.f32 %v926, 1e-12
        %v995 = vmax.f32 %v933, 1e-12
        %v996 = vmax.f32 %v940, 1e-12
        %v997 = vmax.f32 %v947, 1e-12
        %v998 = vmax.f32 %v954, 1e-12
        %v999 = vmax.f32 %v961, 1e-12
        %v1000 = vmax.f32 %v968, 1e-12
        %v1001 = vrcp.pop %v969
        %v1002 = vmul.f32 %v523, %v1001
        %v1003 = vrcp.pop %v970
        %v1004 = vmul.f32 %v526, %v1003
        %v1005 = vrcp.pop %v971
        %v1006 = vmul.f32 %v531, %v1005
        %v1007 = vrcp.pop %v972
        %v1008 = vmul.f32 %v534, %v1007
        %v1009 = vrcp.pop %v973
        %v1010 = vmul.f32 %v539, %v1009
        %v1011 = vrcp.pop %v974
        %v1012 = vmul.f32 %v542, %v1011
        %v1013 = vrcp.pop %v975
        %v1014 = vmul.f32 %v547, %v1013
        %v1015 = vrcp.pop %v976
        %v1016 = vmul.f32 %v550, %v1015
        %v1017 = vrcp.pop %v977
        %v1018 = vmul.f32 %v555, %v1017
        %v1019 = vrcp.pop %v978
        %v1020 = vmul.f32 %v558, %v1019
        %v1021 = vrcp.pop %v979
        %v1022 = vmul.f32 %v563, %v1021
        %v1023 = vrcp.pop %v980
        %v1024 = vmul.f32 %v566, %v1023
        %v1025 = vrcp.pop %v981
        %v1026 = vmul.f32 %v571, %v1025
        %v1027 = vrcp.pop %v982
        %v1028 = vmul.f32 %v574, %v1027
        %v1029 = vrcp.pop %v983
        %v1030 = vmul.f32 %v579, %v1029
        %v1031 = vrcp.pop %v984
        %v1032 = vmul.f32 %v582, %v1031
        %v1033 = vrcp.pop %v985
        %v1034 = vmul.f32 %v587, %v1033
        %v1035 = vrcp.pop %v986
        %v1036 = vmul.f32 %v590, %v1035
        %v1037 = vrcp.pop %v987
        %v1038 = vmul.f32 %v595, %v1037
        %v1039 = vrcp.pop %v988
        %v1040 = vmul.f32 %v598, %v1039
        %v1041 = vrcp.pop %v989
        %v1042 = vmul.f32 %v603, %v1041
        %v1043 = vrcp.pop %v990
        %v1044 = vmul.f32 %v606, %v1043
        %v1045 = vrcp.pop %v991
        %v1046 = vmul.f32 %v611, %v1045
        %v1047 = vrcp.pop %v992
        %v1048 = vmul.f32 %v614, %v1047
        %v1049 = vrcp.pop %v993
        %v1050 = vmul.f32 %v619, %v1049
        %v1051 = vrcp.pop %v994
        %v1052 = vmul.f32 %v622, %v1051
        %v1053 = vrcp.pop %v995
        %v1054 = vmul.f32 %v627, %v1053
        %v1055 = vrcp.pop %v996
        %v1056 = vmul.f32 %v630, %v1055
        %v1057 = vrcp.pop %v997
        %v1058 = vmul.f32 %v635, %v1057
        %v1059 = vrcp.pop %v998
        %v1060 = vmul.f32 %v638, %v1059
        %v1061 = vrcp.pop %v999
        %v1062 = vmul.f32 %v643, %v1061
        %v1063 = vrcp.pop %v1000
        %v1064 = vmul.f32 %v646, %v1063
        %v1065 = vpack.c.bf16 %v1004, %v1002
        %v1066 = vpack.c.bf16 %v1008, %v1006
        %v1067 = vpack.c.bf16 %v1012, %v1010
        %v1068 = vpack.c.bf16 %v1016, %v1014
        %v1069 = vpack.c.bf16 %v1020, %v1018
        %v1070 = vpack.c.bf16 %v1024, %v1022
        %v1071 = vpack.c.bf16 %v1028, %v1026
        %v1072 = vpack.c.bf16 %v1032, %v1030
        %v1073 = vpack.c.bf16 %v1036, %v1034
        %v1074 = vpack.c.bf16 %v1040, %v1038
        %v1075 = vpack.c.bf16 %v1044, %v1042
        %v1076 = vpack.c.bf16 %v1048, %v1046
        %v1077 = vpack.c.bf16 %v1052, %v1050
        %v1078 = vpack.c.bf16 %v1056, %v1054
        %v1079 = vpack.c.bf16 %v1060, %v1058
        %v1080 = vpack.c.bf16 %v1064, %v1062
        %v1097 = vunpack.c.l.b16 %v1065
        %v1098 = vunpack.c.h.b16 %v1065
        %v1099 = vunpack.c.l.b16 %v1066
        %v1100 = vunpack.c.h.b16 %v1066
        %v1101 = vunpack.c.l.b16 %v1067
        %v1102 = vunpack.c.h.b16 %v1067
        %v1103 = vunpack.c.l.b16 %v1068
        %v1104 = vunpack.c.h.b16 %v1068
        %v1105 = vunpack.c.l.b16 %v1069
        %v1106 = vunpack.c.h.b16 %v1069
        %v1107 = vunpack.c.l.b16 %v1070
        %v1108 = vunpack.c.h.b16 %v1070
        %v1109 = vunpack.c.l.b16 %v1071
        %v1110 = vunpack.c.h.b16 %v1071
        %v1111 = vunpack.c.l.b16 %v1072
        %v1112 = vunpack.c.h.b16 %v1072
        %v1113 = vunpack.c.l.b16 %v1073
        %v1114 = vunpack.c.h.b16 %v1073
        %v1115 = vunpack.c.l.b16 %v1074
        %v1116 = vunpack.c.h.b16 %v1074
        %v1117 = vunpack.c.l.b16 %v1075
        %v1118 = vunpack.c.h.b16 %v1075
        %v1119 = vunpack.c.l.b16 %v1076
        %v1120 = vunpack.c.h.b16 %v1076
        %v1121 = vunpack.c.l.b16 %v1077
        %v1122 = vunpack.c.h.b16 %v1077
        %v1123 = vunpack.c.l.b16 %v1078
        %v1124 = vunpack.c.h.b16 %v1078
        %v1125 = vunpack.c.l.b16 %v1079
        %v1126 = vunpack.c.h.b16 %v1079
        %v1127 = vunpack.c.l.b16 %v1080
        %v1128 = vunpack.c.h.b16 %v1080
        %v1129 = vpack.c.b16 %v1097, %v1097
        %v1130 = vpack.c.b16 %v1098, %v1098
        %v1131 = vpack.c.b16 %v1099, %v1099
        %v1132 = vpack.c.b16 %v1100, %v1100
        %v1133 = vpack.c.b16 %v1101, %v1101
        %v1134 = vpack.c.b16 %v1102, %v1102
        %v1135 = vpack.c.b16 %v1103, %v1103
        %v1136 = vpack.c.b16 %v1104, %v1104
        %v1137 = vpack.c.b16 %v1105, %v1105
        %v1138 = vpack.c.b16 %v1106, %v1106
        %v1139 = vpack.c.b16 %v1107, %v1107
        %v1140 = vpack.c.b16 %v1108, %v1108
        %v1141 = vpack.c.b16 %v1109, %v1109
        %v1142 = vpack.c.b16 %v1110, %v1110
        %v1143 = vpack.c.b16 %v1111, %v1111
        %v1144 = vpack.c.b16 %v1112, %v1112
        %v1145 = vpack.c.b16 %v1113, %v1113
        %v1146 = vpack.c.b16 %v1114, %v1114
        %v1147 = vpack.c.b16 %v1115, %v1115
        %v1148 = vpack.c.b16 %v1116, %v1116
        %v1149 = vpack.c.b16 %v1117, %v1117
        %v1150 = vpack.c.b16 %v1118, %v1118
        %v1151 = vpack.c.b16 %v1119, %v1119
        %v1152 = vpack.c.b16 %v1120, %v1120
        %v1153 = vpack.c.b16 %v1121, %v1121
        %v1154 = vpack.c.b16 %v1122, %v1122
        %v1155 = vpack.c.b16 %v1123, %v1123
        %v1156 = vpack.c.b16 %v1124, %v1124
        %v1157 = vpack.c.b16 %v1125, %v1125
        %v1158 = vpack.c.b16 %v1126, %v1126
        %v1159 = vpack.c.b16 %v1127, %v1127
        %v1160 = vpack.c.b16 %v1128, %v1128
        %1193 = vst [vmem:[%s166] sm:$0xf] %v1129
        %1194 = vst [vmem:[%s166 + $0x4] sm:$0xf] %v1130
        %1195 = vst [vmem:[%s166 + $0x8] sm:$0xf] %v1131
        %1196 = vst [vmem:[%s166 + $0xc] sm:$0xf] %v1132
        %1197 = vst [vmem:[%s166 + $0x10] sm:$0xf] %v1133
        %1198 = vst [vmem:[%s166 + $0x14] sm:$0xf] %v1134
        %1199 = vst [vmem:[%s166 + $0x18] sm:$0xf] %v1135
        %1200 = vst [vmem:[%s166 + $0x1c] sm:$0xf] %v1136
        %1201 = vst [vmem:[%s166 + $0x20] sm:$0xf] %v1137
        %1202 = vst [vmem:[%s166 + $0x24] sm:$0xf] %v1138
        %1203 = vst [vmem:[%s166 + $0x28] sm:$0xf] %v1139
        %1204 = vst [vmem:[%s166 + $0x2c] sm:$0xf] %v1140
        %1205 = vst [vmem:[%s166 + $0x30] sm:$0xf] %v1141
        %1206 = vst [vmem:[%s166 + $0x34] sm:$0xf] %v1142
        %1207 = vst [vmem:[%s166 + $0x38] sm:$0xf] %v1143
        %1208 = vst [vmem:[%s166 + $0x3c] sm:$0xf] %v1144
        %1209 = vst [vmem:[%s166 + $0x40] sm:$0xf] %v1145
        %1210 = vst [vmem:[%s166 + $0x44] sm:$0xf] %v1146
        %1211 = vst [vmem:[%s166 + $0x48] sm:$0xf] %v1147
        %1212 = vst [vmem:[%s166 + $0x4c] sm:$0xf] %v1148
        %1213 = vst [vmem:[%s166 + $0x50] sm:$0xf] %v1149
        %1214 = vst [vmem:[%s166 + $0x54] sm:$0xf] %v1150
        %1215 = vst [vmem:[%s166 + $0x58] sm:$0xf] %v1151
        %1216 = vst [vmem:[%s166 + $0x5c] sm:$0xf] %v1152
        %1217 = vst [vmem:[%s166 + $0x60] sm:$0xf] %v1153
        %1218 = vst [vmem:[%s166 + $0x64] sm:$0xf] %v1154
        %1219 = vst [vmem:[%s166 + $0x68] sm:$0xf] %v1155
        %1220 = vst [vmem:[%s166 + $0x6c] sm:$0xf] %v1156
        %1221 = vst [vmem:[%s166 + $0x70] sm:$0xf] %v1157
        %1222 = vst [vmem:[%s166 + $0x74] sm:$0xf] %v1158
        %1223 = vst [vmem:[%s166 + $0x78] sm:$0xf] %v1159
        %1224 = vst [vmem:[%s166 + $0x7c] sm:$0xf] %v1160
        %s1225 = sand.u32 %s93, 1
        %s1226 = scalar_lea.sflag [#allocation3], %s1225
        %s1227 = sand.u32 %s93, 1
        %s1228 = smul.addr %s1227, 128
        %s1229 = scalar_lea.vmem [#allocation2], %s1228
        // Predicated region
        $region33: #{tpu_custom_call.1} parent=31 // pred_check
          %p1230 = pneg %p103
        $region34: #{tpu_custom_call.1} parent=31 // pred_check_branch
          %1232 = sbr.rel (%p1230) target = $region36
        $region35: #{tpu_custom_call.1} parent=31 // pred_region
          %s1233 = smul.u32 32, %s17
          %s1235 = ssub.s32 2048, 2048
          %1236 = vsyncadd %s1226, %s1235
          %s1237 = smul.addr %s1233, 64
          %s1238 = scalar_lea.hbm %s3, %s1237
          %s1239 = sshll.u32 %s1229, 4
          %s1240 = int_to_ptr.vmem [resolvable:$true] %s1239
          %1245 = dma.vmem_to_hbm [thread:$0]  %s1240, 2048, %s1238, %s1226, 64, 64, 4
        $region36: #{tpu_custom_call.1} parent=31 // pred_fallthru
          _
      $region32: #{tpu_custom_call.1} parent=5 // pred_fallthru
        _
      %p1246 = scmp.le.s32.totalorder 2, %s12
      // Predicated region
      $region37: #{tpu_custom_call.1} parent=5 // pred_check
        %p1247 = pneg %p1246
      $region38: #{tpu_custom_call.1} parent=5 // pred_check_branch
        %1249 = sbr.rel (%p1247) target = $region40
      $region39: #{tpu_custom_call.1} parent=5 // pred_region
        %s1250 = ssub.s32 %s12, 2
        // Predicated region
        $region41: #{tpu_custom_call.1} parent=39 // pred_check
          %p1251 = pneg %p109
        $region42: #{tpu_custom_call.1} parent=39 // pred_check_branch
          %1253 = sbr.rel (%p1251) target = $region44
        $region43: #{tpu_custom_call.1} parent=39 // pred_region
          %s1254 = sand.u32 %s94, 1
          %s1255 = scalar_lea.sflag [#allocation3], %s1254
          %s1256 = sand.u32 %s94, 1
          %s1257 = smul.addr %s1256, 128
          %s1258 = scalar_lea.vmem [#allocation2], %s1257
          %1259 = dma.done %s1255, 2048
        $region44: #{tpu_custom_call.1} parent=39 // pred_fallthru
          _
      $region40: #{tpu_custom_call.1} parent=5 // pred_fallthru
        _
    $region6: #{tpu_custom_call.1} parent=1 // loop_footer
      %s16 = sadd.s32 1, %s12
    $region7: #{tpu_custom_call.1} parent=1 // loop_footer_branch
      %11 = sbr.rel target = $region3
    $region8: #{tpu_custom_call.1} parent=1 // loop_exit
      _
    %1260 = vsyncpa [#allocation3], 1
    %s1261 = scalar_lea.sflag [#allocation3], 1
    %1262 = vsyncpa %s1261, 1

</llo_original>
